<compile_context>
chip_gen: v7x
topology: tpu7x:2x2x1
jax: 0.10.0
libtpu: 0.0.40
codegen_flags: <defaults>
</compile_context>

<pallas_src>
import functools
import math

import jax
import jax.numpy as jnp
from jax.experimental import pallas as pl
from jax.experimental.pallas import tpu as pltpu

LOG_SIG_MAX = 2.0
LOG_SIG_MIN = -20.0

LANE = 128
SUBLANE = 8

# Target total VMEM (2x resident weights + per-tile working set); comfortably
# below v7x's 64 MiB physical and raisable above v5e's 16 MiB scoped default.
_VMEM_TILE_BUDGET = 40 << 20


def _round_up(x, m):
    return (x + m - 1) // m * m


def _softplus_compute_dtype():
    """bf16 EUP path on v6e/v7x; f32 on v5e/older (no bf16 VPU/EUP)."""
    try:
        kind = jax.devices()[0].device_kind.lower()
    except Exception:
        return jnp.float32
    if "v6" in kind or "v7" in kind:
        return jnp.bfloat16
    return jnp.float32


def gaussian_policy_kernel(
    state_ref,
    w1_ref, b1_ref,
    w2_ref, b2_ref,
    w3_ref, b3_ref,
    wh_ref, bh_ref,
    out_ref,
    *, num_actions, compute_dtype,
):
    w_dtype = w1_ref.dtype  # bf16 for the MXU

    def linear(x_low, w_ref, b_ref):
        # bf16 x bf16 matmul with f32 accumulation; f32 bias broadcast over batch.
        return jnp.dot(x_low, w_ref[...], preferred_element_type=jnp.float32) + b_ref[...]

    def softplus(pre):
        # softplus(x) = x for x > 20, else log1p(exp(x)).  No inner clamp: the
        # overflow of exp() in the x > 20 branch is discarded by the where.
        # exp/log1p run in `compute_dtype` (bf16 on v6e/v7x -> faster EUP path).
        xc = pre.astype(compute_dtype)
        sp = jnp.log1p(jnp.exp(xc))
        act = jnp.where(pre > 20.0, pre.astype(compute_dtype), sp)
        return act.astype(w_dtype)  # bf16 for the next MXU matmul

    x = state_ref[...].astype(w_dtype)
    h = softplus(linear(x, w1_ref, b1_ref))
    h = softplus(linear(h, w2_ref, b2_ref))
    h = softplus(linear(h, w3_ref, b3_ref))

    # Fused heads: one matmul.  Lanes [0, A) = mean, [A, 2A) = log_std, rest padding.
    out = linear(h, wh_ref, bh_ref)

    # Clamp only the log_std half via a lane-index mask (padding lanes are sliced
    # away in the wrapper, so clipping them too is harmless).
    lane = jax.lax.broadcasted_iota(jnp.int32, out.shape, 1)
    clipped = jnp.clip(out, LOG_SIG_MIN, LOG_SIG_MAX)
    out = jnp.where(lane >= num_actions, clipped, out)

    out_ref[...] = out.astype(out_ref.dtype)


def init_params(key, num_inputs, num_actions, hidden_dim):
    """Xavier-uniform (gain=1) weights, zero biases — matches weights_init_.
    Weights stored as [in, out] (transposed vs PyTorch)."""
    def xavier(key, fan_in, fan_out):
        limit = math.sqrt(6.0 / (fan_in + fan_out))
        return jax.random.uniform(
            key, (fan_in, fan_out), jnp.float32, minval=-limit, maxval=limit
        )

    keys = jax.random.split(key, 5)
    return {
        "w1": xavier(keys[0], num_inputs, hidden_dim),
        "b1": jnp.zeros((1, hidden_dim), jnp.float32),
        "w2": xavier(keys[1], hidden_dim, hidden_dim),
        "b2": jnp.zeros((1, hidden_dim), jnp.float32),
        "w3": xavier(keys[2], hidden_dim, hidden_dim),
        "b3": jnp.zeros((1, hidden_dim), jnp.float32),
        "wm": xavier(keys[3], hidden_dim, num_actions),
        "bm": jnp.zeros((1, num_actions), jnp.float32),
        "ws": xavier(keys[4], hidden_dim, num_actions),
        "bs": jnp.zeros((1, num_actions), jnp.float32),
    }


def prepare_params(params, *, weights_dtype=jnp.bfloat16):
    """One-time prep: fuse the two heads, zero-pad feature dims to multiples of 128
    (lane-aligned unmasked tiles), and cast weights to bf16 (halves HBM/VMEM bytes,
    MXU-native).  Zero-padded weight ROWS remain exactly 0 after the bf16 cast,
    which is what neutralizes the softplus(0)=ln2 padding lanes."""
    num_inputs, hidden = params["w1"].shape
    num_actions = params["wm"].shape[1]

    in_pad = _round_up(num_inputs, LANE)
    h_pad = _round_up(hidden, LANE)
    head_pad = _round_up(2 * num_actions, LANE)

    def pad2(x, r, c, dtype):
        out = jnp.zeros((r, c), jnp.float32).at[: x.shape[0], : x.shape[1]].set(x)
        return out.astype(dtype)

    wh = jnp.concatenate([params["wm"], params["ws"]], axis=1)   # [hidden, 2A]
    bh = jnp.concatenate([params["bm"], params["bs"]], axis=1)   # [1, 2A]

    return {
        "w1": pad2(params["w1"], in_pad, h_pad, weights_dtype),
        "b1": pad2(params["b1"], 1, h_pad, jnp.float32),
        "w2": pad2(params["w2"], h_pad, h_pad, weights_dtype),
        "b2": pad2(params["b2"], 1, h_pad, jnp.float32),
        "w3": pad2(params["w3"], h_pad, h_pad, weights_dtype),
        "b3": pad2(params["b3"], 1, h_pad, jnp.float32),
        "wh": pad2(wh, h_pad, head_pad, weights_dtype),
        "bh": pad2(bh, 1, head_pad, jnp.float32),
        "num_inputs": num_inputs,
        "num_actions": num_actions,
    }


def gaussian_policy_forward(state, prepared, *, block_b=512, compute_dtype=None):
    """state: [B, num_inputs] f32.  Returns (mean, log_std), each [B, num_actions]."""
    B, num_inputs = state.shape
    num_actions = prepared["num_actions"]
    assert num_inputs == prepared["num_inputs"]

    in_pad = prepared["w1"].shape[0]
    h_pad = prepared["w2"].shape[0]
    head_pad = prepared["wh"].shape[1]

    if compute_dtype is None:
        compute_dtype = _softplus_compute_dtype()

    # Lane-pad the feature dim only if needed (cheap, narrow).  The batch dim is
    # NEVER padded: the last grid tile may be ragged; garbage rows stay confined
    # to themselves and their OOB output rows are dropped on store.
    if num_inputs != in_pad:
        state_in = jnp.pad(state, ((0, 0), (0, in_pad - num_inputs)))
    else:
        state_in = state

    weights_bytes = sum(
        int(prepared[k].size) * prepared[k].dtype.itemsize
        for k in ("w1", "b1", "w2", "b2", "w3", "b3", "wh", "bh"))

    # Per-row VMEM: double-buffered state/out blocks (f32) + live f32/bf16
    # intermediates of width h_pad.
    row_bytes = 2 * in_pad * 4 + 2 * head_pad * 4 + 6 * h_pad * 4

    if B <= SUBLANE:
        tb = B                       # block == full dim (allowed for tiny batches)
    else:
        budget = max(_VMEM_TILE_BUDGET - 2 * weights_bytes, SUBLANE * row_bytes)
        tb_cap = max(SUBLANE, (budget // row_bytes) // SUBLANE * SUBLANE)
        # >= 2 tiles so both v7x TensorCores get work; tile sized from B so the
        # ragged last tile wastes at most a few rows (no round-up-to-block_b).
        n_tiles = max(2, pl.cdiv(B, block_b))
        tb = max(SUBLANE, min(block_b, _round_up(pl.cdiv(B, n_tiles), SUBLANE), tb_cap))
    grid = (pl.cdiv(B, tb),)

    # Explicit scoped-VMEM limit: raises v5e's 16 MiB default, stays well under
    # v7x's 64 MiB physical for these shapes.
    vmem_need = 2 * weights_bytes + tb * row_bytes + (2 << 20)
    vmem_limit = int(min(max(vmem_need, 32 << 20), 100 << 20))

    kernel = functools.partial(
        gaussian_policy_kernel, num_actions=num_actions, compute_dtype=compute_dtype)

    def resident(arr):
        # Full-array block, same block every grid step (stays resident in VMEM).
        return pl.BlockSpec(arr.shape, lambda i: (0, 0))

    out = pl.pallas_call(
        kernel,
        out_shape=jax.ShapeDtypeStruct((B, head_pad), jnp.float32),
        grid=grid,
        in_specs=[
            pl.BlockSpec((tb, in_pad), lambda i: (i, 0)),
            resident(prepared["w1"]), resident(prepared["b1"]),
            resident(prepared["w2"]), resident(prepared["b2"]),
            resident(prepared["w3"]), resident(prepared["b3"]),
            resident(prepared["wh"]), resident(prepared["bh"]),
        ],
        out_specs=pl.BlockSpec((tb, head_pad), lambda i: (i, 0)),
        compiler_params=pltpu.CompilerParams(
            dimension_semantics=("parallel",),   # batch tiles independent -> v7x TCs
            vmem_limit_bytes=vmem_limit,
        ),
    )(
        state_in,
        prepared["w1"], prepared["b1"],
        prepared["w2"], prepared["b2"],
        prepared["w3"], prepared["b3"],
        prepared["wh"], prepared["bh"],
    )

    mean = out[:, :num_actions]
    log_std = out[:, num_actions:2 * num_actions]
    return mean, log_std


def reference_forward(state, params):
    """Pure-f32 reference matching the PyTorch module."""
    def sp(x):
        return jnp.where(x > 20.0, x, jnp.log1p(jnp.exp(jnp.minimum(x, 20.0))))

    h = sp(state @ params["w1"] + params["b1"])
    h = sp(h @ params["w2"] + params["b2"])
    h = sp(h @ params["w3"] + params["b3"])
    mean = h @ params["wm"] + params["bm"]
    log_std = jnp.clip(h @ params["ws"] + params["bs"], LOG_SIG_MIN, LOG_SIG_MAX)
    return mean, log_std


def _run_case(key, batch, num_inputs, num_actions, hidden_dim, atol, rtol):
    k_state, k_params = jax.random.split(key)
    state = jax.random.normal(k_state, (batch, num_inputs), jnp.float32)
    params = init_params(k_params, num_inputs, num_actions, hidden_dim)
    prepared = prepare_params(params)

    mean, log_std = gaussian_policy_forward(state, prepared)
    mean = jax.block_until_ready(mean)
    log_std = jax.block_until_ready(log_std)

    mean_ref, log_std_ref = reference_forward(state, params)
    assert mean.shape == (batch, num_actions)
    assert log_std.shape == (batch, num_actions)
    # bf16 weights / bf16 softplus (on v6e/v7x) -> loosened tolerance vs f32 ref.
    assert jnp.allclose(mean, mean_ref, atol=atol, rtol=rtol), (
        "mean max|err|=%g" % float(jnp.max(jnp.abs(mean - mean_ref))))
    assert jnp.allclose(log_std, log_std_ref, atol=atol, rtol=rtol), (
        "log_std max|err|=%g" % float(jnp.max(jnp.abs(log_std - log_std_ref))))


if __name__ == "__main__":
    key = jax.random.PRNGKey(0)
    keys = jax.random.split(key, 3)

    # Small, "nice" shapes (single tile).
    _run_case(keys[0], batch=8, num_inputs=16, num_actions=8, hidden_dim=32,
              atol=1e-1, rtol=1e-1)
    # hidden_dim % 128 != 0 and batch % 8 != 0: locks in the zero-padded-weight-row
    # scheme that neutralizes softplus(0) on padding lanes (per the review).
    _run_case(keys[1], batch=5, num_inputs=17, num_actions=3, hidden_dim=200,
              atol=1e-1, rtol=1e-1)
    # Ragged last batch tile: B=20 -> tb=16, grid=2, second tile partially OOB.
    _run_case(keys[2], batch=20, num_inputs=16, num_actions=8, hidden_dim=32,
              atol=1e-1, rtol=1e-1)

    print("KERNEL_OK")
</pallas_src>

<mosaic_0001>
module attributes {stable_mosaic.version = 11 : i64} {
  func.func @gaussian_policy_kernel(%arg0: i32, %arg1: memref<8x128xf32, #tpu.memory_space<vmem>>, %arg2: memref<128x128xbf16, #tpu.memory_space<vmem>>, %arg3: memref<1x128xf32, #tpu.memory_space<vmem>>, %arg4: memref<128x128xbf16, #tpu.memory_space<vmem>>, %arg5: memref<1x128xf32, #tpu.memory_space<vmem>>, %arg6: memref<128x128xbf16, #tpu.memory_space<vmem>>, %arg7: memref<1x128xf32, #tpu.memory_space<vmem>>, %arg8: memref<128x128xbf16, #tpu.memory_space<vmem>>, %arg9: memref<1x128xf32, #tpu.memory_space<vmem>>, %arg10: memref<8x128xf32, #tpu.memory_space<vmem>>) attributes {dimension_semantics = [#tpu.dimension_semantics<parallel>], iteration_bounds = array<i64: 1>, scalar_prefetch = 0 : i64, scratch_operands = 0 : i64, tpu.core_type = #tpu.core_type<tc>, window_params = [{transform_indices = @transform_0, window_bounds = array<i64: 8, 128>}, {pipeline_mode = #tpu.pipeline_mode<synchronous>, transform_indices = @transform_1, window_bounds = array<i64: 128, 128>}, {pipeline_mode = #tpu.pipeline_mode<synchronous>, transform_indices = @transform_2, window_bounds = array<i64: 1, 128>}, {pipeline_mode = #tpu.pipeline_mode<synchronous>, transform_indices = @transform_3, window_bounds = array<i64: 128, 128>}, {pipeline_mode = #tpu.pipeline_mode<synchronous>, transform_indices = @transform_4, window_bounds = array<i64: 1, 128>}, {pipeline_mode = #tpu.pipeline_mode<synchronous>, transform_indices = @transform_5, window_bounds = array<i64: 128, 128>}, {pipeline_mode = #tpu.pipeline_mode<synchronous>, transform_indices = @transform_6, window_bounds = array<i64: 1, 128>}, {pipeline_mode = #tpu.pipeline_mode<synchronous>, transform_indices = @transform_7, window_bounds = array<i64: 128, 128>}, {pipeline_mode = #tpu.pipeline_mode<synchronous>, transform_indices = @transform_8, window_bounds = array<i64: 1, 128>}, {transform_indices = @transform_9, window_bounds = array<i64: 8, 128>}]} {
    %c0 = arith.constant 0 : index
    %c0_0 = arith.constant 0 : index
    %0 = vector.load %arg1[%c0, %c0_0] : memref<8x128xf32, #tpu.memory_space<vmem>>, vector<8x128xf32>
    %1 = arith.truncf %0 : vector<8x128xf32> to vector<8x128xbf16>
    %c0_1 = arith.constant 0 : index
    %c0_2 = arith.constant 0 : index
    %2 = vector.load %arg2[%c0_1, %c0_2] : memref<128x128xbf16, #tpu.memory_space<vmem>>, vector<128x128xbf16>
    %cst = arith.constant dense<0.000000e+00> : vector<8x128xf32>
    %3 = tpu.matmul %1, %2, %cst {dimension_numbers = #tpu.dot_dimension_numbers<[1], [0], [0], [1], [0, 0, 1, 1], [], []>} : vector<8x128xbf16>, vector<128x128xbf16>, vector<8x128xf32> -> vector<8x128xf32>
    %c0_3 = arith.constant 0 : index
    %c0_4 = arith.constant 0 : index
    %4 = vector.load %arg3[%c0_3, %c0_4] : memref<1x128xf32, #tpu.memory_space<vmem>>, vector<1x128xf32>
    %5 = vector.broadcast %4 : vector<1x128xf32> to vector<8x128xf32>
    %6 = arith.addf %3, %5 : vector<8x128xf32>
    %7 = math.exp %6 : vector<8x128xf32>
    %8 = math.log1p %7 : vector<8x128xf32>
    %cst_5 = arith.constant 2.000000e+01 : f32
    %9 = vector.broadcast %cst_5 : f32 to vector<8x128xf32>
    %10 = arith.cmpf ogt, %6, %9 : vector<8x128xf32>
    %11 = arith.select %10, %6, %8 : vector<8x128xi1>, vector<8x128xf32>
    %12 = arith.truncf %11 : vector<8x128xf32> to vector<8x128xbf16>
    %c0_6 = arith.constant 0 : index
    %c0_7 = arith.constant 0 : index
    %13 = vector.load %arg4[%c0_6, %c0_7] : memref<128x128xbf16, #tpu.memory_space<vmem>>, vector<128x128xbf16>
    %cst_8 = arith.constant dense<0.000000e+00> : vector<8x128xf32>
    %14 = tpu.matmul %12, %13, %cst_8 {dimension_numbers = #tpu.dot_dimension_numbers<[1], [0], [0], [1], [0, 0, 1, 1], [], []>} : vector<8x128xbf16>, vector<128x128xbf16>, vector<8x128xf32> -> vector<8x128xf32>
    %c0_9 = arith.constant 0 : index
    %c0_10 = arith.constant 0 : index
    %15 = vector.load %arg5[%c0_9, %c0_10] : memref<1x128xf32, #tpu.memory_space<vmem>>, vector<1x128xf32>
    %16 = vector.broadcast %15 : vector<1x128xf32> to vector<8x128xf32>
    %17 = arith.addf %14, %16 : vector<8x128xf32>
    %18 = math.exp %17 : vector<8x128xf32>
    %19 = math.log1p %18 : vector<8x128xf32>
    %cst_11 = arith.constant 2.000000e+01 : f32
    %20 = vector.broadcast %cst_11 : f32 to vector<8x128xf32>
    %21 = arith.cmpf ogt, %17, %20 : vector<8x128xf32>
    %22 = arith.select %21, %17, %19 : vector<8x128xi1>, vector<8x128xf32>
    %23 = arith.truncf %22 : vector<8x128xf32> to vector<8x128xbf16>
    %c0_12 = arith.constant 0 : index
    %c0_13 = arith.constant 0 : index
    %24 = vector.load %arg6[%c0_12, %c0_13] : memref<128x128xbf16, #tpu.memory_space<vmem>>, vector<128x128xbf16>
    %cst_14 = arith.constant dense<0.000000e+00> : vector<8x128xf32>
    %25 = tpu.matmul %23, %24, %cst_14 {dimension_numbers = #tpu.dot_dimension_numbers<[1], [0], [0], [1], [0, 0, 1, 1], [], []>} : vector<8x128xbf16>, vector<128x128xbf16>, vector<8x128xf32> -> vector<8x128xf32>
    %c0_15 = arith.constant 0 : index
    %c0_16 = arith.constant 0 : index
    %26 = vector.load %arg7[%c0_15, %c0_16] : memref<1x128xf32, #tpu.memory_space<vmem>>, vector<1x128xf32>
    %27 = vector.broadcast %26 : vector<1x128xf32> to vector<8x128xf32>
    %28 = arith.addf %25, %27 : vector<8x128xf32>
    %29 = math.exp %28 : vector<8x128xf32>
    %30 = math.log1p %29 : vector<8x128xf32>
    %cst_17 = arith.constant 2.000000e+01 : f32
    %31 = vector.broadcast %cst_17 : f32 to vector<8x128xf32>
    %32 = arith.cmpf ogt, %28, %31 : vector<8x128xf32>
    %33 = arith.select %32, %28, %30 : vector<8x128xi1>, vector<8x128xf32>
    %34 = arith.truncf %33 : vector<8x128xf32> to vector<8x128xbf16>
    %c0_18 = arith.constant 0 : index
    %c0_19 = arith.constant 0 : index
    %35 = vector.load %arg8[%c0_18, %c0_19] : memref<128x128xbf16, #tpu.memory_space<vmem>>, vector<128x128xbf16>
    %cst_20 = arith.constant dense<0.000000e+00> : vector<8x128xf32>
    %36 = tpu.matmul %34, %35, %cst_20 {dimension_numbers = #tpu.dot_dimension_numbers<[1], [0], [0], [1], [0, 0, 1, 1], [], []>} : vector<8x128xbf16>, vector<128x128xbf16>, vector<8x128xf32> -> vector<8x128xf32>
    %c0_21 = arith.constant 0 : index
    %c0_22 = arith.constant 0 : index
    %37 = vector.load %arg9[%c0_21, %c0_22] : memref<1x128xf32, #tpu.memory_space<vmem>>, vector<1x128xf32>
    %38 = vector.broadcast %37 : vector<1x128xf32> to vector<8x128xf32>
    %39 = arith.addf %36, %38 : vector<8x128xf32>
    %40 = tpu.iota {dimensions = array<i32: 1>} : vector<8x128xi32>
    %cst_23 = arith.constant -2.000000e+01 : f32
    %cst_24 = arith.constant 2.000000e+00 : f32
    %41 = vector.broadcast %cst_23 : f32 to vector<8x128xf32>
    %42 = arith.maximumf %41, %39 : vector<8x128xf32>
    %43 = vector.broadcast %cst_24 : f32 to vector<8x128xf32>
    %44 = arith.minimumf %43, %42 : vector<8x128xf32>
    %c8_i32 = arith.constant 8 : i32
    %45 = vector.broadcast %c8_i32 : i32 to vector<8x128xi32>
    %46 = arith.cmpi sge, %40, %45 : vector<8x128xi32>
    %47 = arith.select %46, %44, %39 : vector<8x128xi1>, vector<8x128xf32>
    %c0_25 = arith.constant 0 : index
    %c0_26 = arith.constant 0 : index
    %48 = vector.load %arg10[%c0_25, %c0_26] : memref<8x128xf32, #tpu.memory_space<vmem>>, vector<8x128xf32>
    tpu.vector_store %arg10[%c0_25, %c0_26], %47 {strides = array<i32>} : memref<8x128xf32, #tpu.memory_space<vmem>>, vector<8x128xf32>,
    return
  }
  func.func @transform_0(%arg0: i32) -> (i32, i32) {
    %c0_i32 = arith.constant 0 : i32
    %c0_i32_0 = arith.constant 0 : i32
    return %arg0, %c0_i32 : i32, i32
  }
  func.func @transform_1(%arg0: i32) -> (i32, i32) {
    %c0_i32 = arith.constant 0 : i32
    %c0_i32_0 = arith.constant 0 : i32
    %c0_i32_1 = arith.constant 0 : i32
    return %c0_i32, %c0_i32_0 : i32, i32
  }
  func.func @transform_2(%arg0: i32) -> (i32, i32) {
    %c0_i32 = arith.constant 0 : i32
    %c0_i32_0 = arith.constant 0 : i32
    %c0_i32_1 = arith.constant 0 : i32
    return %c0_i32, %c0_i32_0 : i32, i32
  }
  func.func @transform_3(%arg0: i32) -> (i32, i32) {
    %c0_i32 = arith.constant 0 : i32
    %c0_i32_0 = arith.constant 0 : i32
    %c0_i32_1 = arith.constant 0 : i32
    return %c0_i32, %c0_i32_0 : i32, i32
  }
  func.func @transform_4(%arg0: i32) -> (i32, i32) {
    %c0_i32 = arith.constant 0 : i32
    %c0_i32_0 = arith.constant 0 : i32
    %c0_i32_1 = arith.constant 0 : i32
    return %c0_i32, %c0_i32_0 : i32, i32
  }
  func.func @transform_5(%arg0: i32) -> (i32, i32) {
    %c0_i32 = arith.constant 0 : i32
    %c0_i32_0 = arith.constant 0 : i32
    %c0_i32_1 = arith.constant 0 : i32
    return %c0_i32, %c0_i32_0 : i32, i32
  }
  func.func @transform_6(%arg0: i32) -> (i32, i32) {
    %c0_i32 = arith.constant 0 : i32
    %c0_i32_0 = arith.constant 0 : i32
    %c0_i32_1 = arith.constant 0 : i32
    return %c0_i32, %c0_i32_0 : i32, i32
  }
  func.func @transform_7(%arg0: i32) -> (i32, i32) {
    %c0_i32 = arith.constant 0 : i32
    %c0_i32_0 = arith.constant 0 : i32
    %c0_i32_1 = arith.constant 0 : i32
    return %c0_i32, %c0_i32_0 : i32, i32
  }
  func.func @transform_8(%arg0: i32) -> (i32, i32) {
    %c0_i32 = arith.constant 0 : i32
    %c0_i32_0 = arith.constant 0 : i32
    %c0_i32_1 = arith.constant 0 : i32
    return %c0_i32, %c0_i32_0 : i32, i32
  }
  func.func @transform_9(%arg0: i32) -> (i32, i32) {
    %c0_i32 = arith.constant 0 : i32
    %c0_i32_0 = arith.constant 0 : i32
    return %arg0, %c0_i32 : i32, i32
  }
}

</mosaic_0001>

<llo_original>
// kernel: tpu_custom_call.1
$region0: #{tpu_custom_call.1}
  #allocation0 [shape = 'u32[]', space=smem, size = 0x4, offset = 0x4, fixed_abs, tag = 'smem constant byte address 0x4 - core index']
  #allocation1 [shape = 'u32[144,128]{1,0:T(1,128)}', space=vmem, size = 0x12000, scoped, tag = 'internal scratch']
  %s0 = inlined_call_operand.hbm [shape: f32[8,128], index: 0, kind: input, shape index: {}]
  %s1 = inlined_call_operand.hbm [shape: bf16[128,128], index: 1, kind: input, shape index: {}]
  %s2 = inlined_call_operand.vmem [shape: f32[1,128], index: 2, kind: input, shape index: {}]
  %s3 = inlined_call_operand.hbm [shape: bf16[128,128], index: 3, kind: input, shape index: {}]
  %s4 = inlined_call_operand.vmem [shape: f32[1,128], index: 4, kind: input, shape index: {}]
  %s5 = inlined_call_operand.hbm [shape: bf16[128,128], index: 5, kind: input, shape index: {}]
  %s6 = inlined_call_operand.vmem [shape: f32[1,128], index: 6, kind: input, shape index: {}]
  %s7 = inlined_call_operand.hbm [shape: bf16[128,128], index: 7, kind: input, shape index: {}]
  %s8 = inlined_call_operand.vmem [shape: f32[1,128], index: 8, kind: input, shape index: {}]
  %s9 = inlined_call_operand.hbm [shape: f32[8,128], index: 9, kind: output, shape index: {}]
  %s10 = sld [smem:[#allocation0]]
  $region66: #{tpu_custom_call.1} parent=0
    _
  %s12 = ssub.s32 1, %s10
  %s13 = scalar_select 0, %s12, %s10
  $region1: #{tpu_custom_call.1} parent=0
    #allocation2 [shape = 'u8[4096]{0}', space=vmem, size = 0x1000, scoped, tag = 'input window, operand 0, single buffered']
    #allocation3 [shape = 's32[1]{0}', space=sflag, size = 0x4, scoped, tag = 'scoped memory for tpu_custom_call.1']
    #allocation4 [shape = 's32[1]{0}', space=sflag, size = 0x4, scoped, tag = 'scoped memory for tpu_custom_call.1']
    #allocation5 [shape = 'u8[32768]{0}', space=vmem, size = 0x8000, scoped, tag = 'input window, operand 1, single buffered']
    #allocation6 [shape = 's32[1]{0}', space=sflag, size = 0x4, scoped, tag = 'scoped memory for tpu_custom_call.1']
    #allocation7 [shape = 'u8[32768]{0}', space=vmem, size = 0x8000, scoped, tag = 'input window, operand 3, single buffered']
    #allocation8 [shape = 'u8[32768]{0}', space=vmem, size = 0x8000, scoped, tag = 'input window, operand 5, single buffered']
    #allocation9 [shape = 's32[1]{0}', space=sflag, size = 0x4, scoped, tag = 'scoped memory for tpu_custom_call.1']
    #allocation10 [shape = 'u8[32768]{0}', space=vmem, size = 0x8000, scoped, tag = 'input window, operand 7, single buffered']
    #allocation11 [shape = 'u8[4096]{0}', space=vmem, size = 0x1000, scoped, tag = 'output window, operand 0, single buffered']
    %14 = vsyncpa [#allocation3], 0
    %15 = vsyncpa [#allocation6], 0
    %16 = vsyncpa [#allocation9], 0
    %17 = vsyncpa [#allocation4], 0
    // Predicated region
    $region2: #{tpu_custom_call.1} parent=1 // pred_check
      _
    $region3: #{tpu_custom_call.1} parent=1 // pred_check_branch
      %19 = sbr.rel (0) target = $region5
    $region4: #{tpu_custom_call.1} parent=1 // pred_region
      %s21 = ssub.s32 128, 128
      %22 = vsyncadd [#allocation3], %s21
      %s24 = sshll.u32 [#allocation2], 4
      %s25 = int_to_ptr.vmem [resolvable:$true] %s24
      %27 = dma.hbm_to_vmem [thread:$0]  %s0, 128, %s25, [#allocation3]
    $region5: #{tpu_custom_call.1} parent=1 // pred_fallthru
      _
    // Predicated region
    $region6: #{tpu_custom_call.1} parent=1 // pred_check
      _
    $region7: #{tpu_custom_call.1} parent=1 // pred_check_branch
      %29 = sbr.rel (0) target = $region9
    $region8: #{tpu_custom_call.1} parent=1 // pred_region
      %s31 = ssub.s32 1024, 1024
      %32 = vsyncadd [#allocation6], %s31
      %s33 = sshll.u32 [#allocation5], 4
      %s34 = int_to_ptr.vmem [resolvable:$true] %s33
      %39 = dma.hbm_to_vmem [thread:$0]  %s1, 1024, %s34, [#allocation6], 64, 64, 4
    $region9: #{tpu_custom_call.1} parent=1 // pred_fallthru
      _
    // Predicated region
    $region10: #{tpu_custom_call.1} parent=1 // pred_check
      _
    $region11: #{tpu_custom_call.1} parent=1 // pred_check_branch
      %41 = sbr.rel (0) target = $region13
    $region12: #{tpu_custom_call.1} parent=1 // pred_region
      _
    $region13: #{tpu_custom_call.1} parent=1 // pred_fallthru
      _
    // Predicated region
    $region14: #{tpu_custom_call.1} parent=1 // pred_check
      _
    $region15: #{tpu_custom_call.1} parent=1 // pred_check_branch
      %43 = sbr.rel (0) target = $region17
    $region16: #{tpu_custom_call.1} parent=1 // pred_region
      %s45 = ssub.s32 1024, 1024
      %46 = vsyncadd [#allocation6], %s45
      %s47 = sshll.u32 [#allocation7], 4
      %s48 = int_to_ptr.vmem [resolvable:$true] %s47
      %53 = dma.hbm_to_vmem [thread:$0]  %s3, 1024, %s48, [#allocation6], 64, 64, 4
    $region17: #{tpu_custom_call.1} parent=1 // pred_fallthru
      _
    // Predicated region
    $region18: #{tpu_custom_call.1} parent=1 // pred_check
      _
    $region19: #{tpu_custom_call.1} parent=1 // pred_check_branch
      %55 = sbr.rel (0) target = $region21
    $region20: #{tpu_custom_call.1} parent=1 // pred_region
      _
    $region21: #{tpu_custom_call.1} parent=1 // pred_fallthru
      _
    // Predicated region
    $region22: #{tpu_custom_call.1} parent=1 // pred_check
      _
    $region23: #{tpu_custom_call.1} parent=1 // pred_check_branch
      %57 = sbr.rel (0) target = $region25
    $region24: #{tpu_custom_call.1} parent=1 // pred_region
      %s59 = ssub.s32 1024, 1024
      %60 = vsyncadd [#allocation9], %s59
      %s61 = sshll.u32 [#allocation8], 4
      %s62 = int_to_ptr.vmem [resolvable:$true] %s61
      %67 = dma.hbm_to_vmem [thread:$0]  %s5, 1024, %s62, [#allocation9], 64, 64, 4
    $region25: #{tpu_custom_call.1} parent=1 // pred_fallthru
      _
    // Predicated region
    $region26: #{tpu_custom_call.1} parent=1 // pred_check
      _
    $region27: #{tpu_custom_call.1} parent=1 // pred_check_branch
      %69 = sbr.rel (0) target = $region29
    $region28: #{tpu_custom_call.1} parent=1 // pred_region
      _
    $region29: #{tpu_custom_call.1} parent=1 // pred_fallthru
      _
    // Predicated region
    $region30: #{tpu_custom_call.1} parent=1 // pred_check
      _
    $region31: #{tpu_custom_call.1} parent=1 // pred_check_branch
      %71 = sbr.rel (0) target = $region33
    $region32: #{tpu_custom_call.1} parent=1 // pred_region
      %s73 = ssub.s32 1024, 1024
      %74 = vsyncadd [#allocation9], %s73
      %s75 = sshll.u32 [#allocation10], 4
      %s76 = int_to_ptr.vmem [resolvable:$true] %s75
      %81 = dma.hbm_to_vmem [thread:$0]  %s7, 1024, %s76, [#allocation9], 64, 64, 4
    $region33: #{tpu_custom_call.1} parent=1 // pred_fallthru
      _
    // Predicated region
    $region34: #{tpu_custom_call.1} parent=1 // pred_check
      _
    $region35: #{tpu_custom_call.1} parent=1 // pred_check_branch
      %83 = sbr.rel (0) target = $region37
    $region36: #{tpu_custom_call.1} parent=1 // pred_region
      _
    $region37: #{tpu_custom_call.1} parent=1 // pred_fallthru
      _
    // Predicated region
    $region38: #{tpu_custom_call.1} parent=1 // pred_check
      _
    $region39: #{tpu_custom_call.1} parent=1 // pred_check_branch
      %85 = sbr.rel (0) target = $region41
    $region40: #{tpu_custom_call.1} parent=1 // pred_region
      %86 = dma.done [#allocation3], 128
    $region41: #{tpu_custom_call.1} parent=1 // pred_fallthru
      _
    // Predicated region
    $region42: #{tpu_custom_call.1} parent=1 // pred_check
      _
    $region43: #{tpu_custom_call.1} parent=1 // pred_check_branch
      %88 = sbr.rel (0) target = $region45
    $region44: #{tpu_custom_call.1} parent=1 // pred_region
      %89 = dma.done [#allocation6], 1024
    $region45: #{tpu_custom_call.1} parent=1 // pred_fallthru
      _
    // Predicated region
    $region46: #{tpu_custom_call.1} parent=1 // pred_check
      _
    $region47: #{tpu_custom_call.1} parent=1 // pred_check_branch
      %91 = sbr.rel (0) target = $region49
    $region48: #{tpu_custom_call.1} parent=1 // pred_region
      %92 = dma.done [#allocation6], 1024
    $region49: #{tpu_custom_call.1} parent=1 // pred_fallthru
      _
    // Predicated region
    $region50: #{tpu_custom_call.1} parent=1 // pred_check
      _
    $region51: #{tpu_custom_call.1} parent=1 // pred_check_branch
      %94 = sbr.rel (0) target = $region53
    $region52: #{tpu_custom_call.1} parent=1 // pred_region
      %95 = dma.done [#allocation9], 1024
    $region53: #{tpu_custom_call.1} parent=1 // pred_fallthru
      _
    // Predicated region
    $region54: #{tpu_custom_call.1} parent=1 // pred_check
      _
    $region55: #{tpu_custom_call.1} parent=1 // pred_check_branch
      %97 = sbr.rel (0) target = $region57
    $region56: #{tpu_custom_call.1} parent=1 // pred_region
      %98 = dma.done [#allocation9], 1024
    $region57: #{tpu_custom_call.1} parent=1 // pred_fallthru
      _
    %v100 = vld [vmem:[#allocation2] sm:$0xff]
    %v101 = vpack.c.bf16 %v100, %v100
    %v102 = vld [vmem:[#allocation5] sm:$0xf]
    %v103 = vld [vmem:[#allocation5 + $0x4] sm:$0xf]
    %v104 = vld [vmem:[#allocation5 + $0x8] sm:$0xf]
    %v105 = vld [vmem:[#allocation5 + $0xc] sm:$0xf]
    %v106 = vld [vmem:[#allocation5 + $0x10] sm:$0xf]
    %v107 = vld [vmem:[#allocation5 + $0x14] sm:$0xf]
    %v108 = vld [vmem:[#allocation5 + $0x18] sm:$0xf]
    %v109 = vld [vmem:[#allocation5 + $0x1c] sm:$0xf]
    %v110 = vld [vmem:[#allocation5 + $0x20] sm:$0xf]
    %v111 = vld [vmem:[#allocation5 + $0x24] sm:$0xf]
    %v112 = vld [vmem:[#allocation5 + $0x28] sm:$0xf]
    %v113 = vld [vmem:[#allocation5 + $0x2c] sm:$0xf]
    %v114 = vld [vmem:[#allocation5 + $0x30] sm:$0xf]
    %v115 = vld [vmem:[#allocation5 + $0x34] sm:$0xf]
    %v116 = vld [vmem:[#allocation5 + $0x38] sm:$0xf]
    %v117 = vld [vmem:[#allocation5 + $0x3c] sm:$0xf]
    %v118 = vld [vmem:[%s2] sm:$0x1]
    %v120 = vlaneseq
    %v121 = vshrl.u32 %v120, 7
    %v122 = vsub.s32 0, %v121
    %v123 = vrot.slane %v118, %v122
    %v141 = vunpack.c.l.b16 %v102
    %v142 = vunpack.c.l.b16 %v103
    %v143 = vunpack.c.l.b16 %v104
    %v144 = vunpack.c.l.b16 %v105
    %v145 = vunpack.c.l.b16 %v106
    %v146 = vunpack.c.l.b16 %v107
    %v147 = vunpack.c.l.b16 %v108
    %v148 = vunpack.c.l.b16 %v109
    %v149 = vunpack.c.l.b16 %v110
    %v150 = vunpack.c.l.b16 %v111
    %v151 = vunpack.c.l.b16 %v112
    %v152 = vunpack.c.l.b16 %v113
    %v153 = vunpack.c.l.b16 %v114
    %v154 = vunpack.c.l.b16 %v115
    %v155 = vunpack.c.l.b16 %v116
    %v156 = vunpack.c.l.b16 %v117
    %v157 = vpack.c.b16 %v142, %v141
    %v158 = vpack.c.b16 %v144, %v143
    %v159 = vpack.c.b16 %v146, %v145
    %v160 = vpack.c.b16 %v148, %v147
    %v161 = vpack.c.b16 %v150, %v149
    %v162 = vpack.c.b16 %v152, %v151
    %v163 = vpack.c.b16 %v154, %v153
    %v164 = vpack.c.b16 %v156, %v155
    %173 = vmatprep.subr.bf16.mxu0 0
    %174 = vmatpush1.bf16.msra.mxu0 %v157
    %175 = vmatprep.subr.bf16.mxu0 0
    %176 = vmatpush1.bf16.msra.mxu0 %v158
    %177 = vmatprep.subr.bf16.mxu0 0
    %178 = vmatpush1.bf16.msra.mxu0 %v159
    %179 = vmatprep.subr.bf16.mxu0 0
    %180 = vmatpush1.bf16.msra.mxu0 %v160
    %181 = vmatprep.subr.bf16.mxu0 0
    %182 = vmatpush1.bf16.msra.mxu0 %v161
    %183 = vmatprep.subr.bf16.mxu0 0
    %184 = vmatpush1.bf16.msra.mxu0 %v162
    %185 = vmatprep.subr.bf16.mxu0 0
    %186 = vmatpush1.bf16.msra.mxu0 %v163
    %187 = vmatprep.subr.bf16.mxu0 0
    %188 = vmatpush1.bf16.msra.mxu0 %v164
    %189 = vmatprep.subr.bf16.mxu0 0
    %190 = vmatpush1.bf16.msra.mxu0 0
    %191 = vmatprep.subr.bf16.mxu0 0
    %192 = vmatpush1.bf16.msra.mxu0 0
    %193 = vmatprep.subr.bf16.mxu0 0
    %194 = vmatpush1.bf16.msra.mxu0 0
    %195 = vmatprep.subr.bf16.mxu0 0
    %196 = vmatpush1.bf16.msra.mxu0 0
    %197 = vmatprep.subr.bf16.mxu0 0
    %198 = vmatpush1.bf16.msra.mxu0 0
    %199 = vmatprep.subr.bf16.mxu0 0
    %200 = vmatpush1.bf16.msra.mxu0 0
    %201 = vmatprep.subr.bf16.mxu0 0
    %202 = vmatpush1.bf16.msra.mxu0 0
    %203 = vmatprep.subr.bf16.mxu0 0
    %204 = vmatpush1.bf16.msra.mxu0 0
    %205 = vmatprep.mubr.bf16.mxu0 0
    %206 = vmatmul.mubr.bf16.gmra.mrb[0].mxu0 %v101
    %v207 = vpop.f32.mrb[0].mxu0
    %v208 = vadd.f32 %v123, %v207
    %v209 = vpop.f32.mrb[0].mxu0
    %v210 = vpop.f32.mrb[0].mxu0
    %v211 = vpop.f32.mrb[0].mxu0
    %212 = vdwg.mxu0
    %v213 = vmul.f32 %v208, 1.442695
    %v214 = vpow.pop %v213
    %v215 = vadd.f32 %v214, 1.0
    %v216 = vlog2.pop %v215
    %v217 = vmul.f32 %v216, 0.6931472
    %v218 = vmul.f32 -0.5, %v214
    %v219 = vadd.f32 %v218, 1.0
    %v220 = vmul.f32 %v219, %v214
    %v221 = vand.u32 2147483647, %v214
    %vm222 = vcmp.lt.f32.partialorder %v221, 0.0004427343
    %v223 = vsel %vm222, %v220, %v217
    %vm224 = vcmp.gt.f32.partialorder %v208, 20.0
    %v225 = vsel %vm224, %v208, %v223
    %v226 = vpack.c.bf16 %v225, %v225
    %v227 = vld [vmem:[#allocation7] sm:$0xf]
    %v228 = vld [vmem:[#allocation7 + $0x4] sm:$0xf]
    %v229 = vld [vmem:[#allocation7 + $0x8] sm:$0xf]
    %v230 = vld [vmem:[#allocation7 + $0xc] sm:$0xf]
    %v231 = vld [vmem:[#allocation7 + $0x10] sm:$0xf]
    %v232 = vld [vmem:[#allocation7 + $0x14] sm:$0xf]
    %v233 = vld [vmem:[#allocation7 + $0x18] sm:$0xf]
    %v234 = vld [vmem:[#allocation7 + $0x1c] sm:$0xf]
    %v235 = vld [vmem:[#allocation7 + $0x20] sm:$0xf]
    %v236 = vld [vmem:[#allocation7 + $0x24] sm:$0xf]
    %v237 = vld [vmem:[#allocation7 + $0x28] sm:$0xf]
    %v238 = vld [vmem:[#allocation7 + $0x2c] sm:$0xf]
    %v239 = vld [vmem:[#allocation7 + $0x30] sm:$0xf]
    %v240 = vld [vmem:[#allocation7 + $0x34] sm:$0xf]
    %v241 = vld [vmem:[#allocation7 + $0x38] sm:$0xf]
    %v242 = vld [vmem:[#allocation7 + $0x3c] sm:$0xf]
    %v243 = vld [vmem:[%s4] sm:$0x1]
    %v245 = vlaneseq
    %v246 = vshrl.u32 %v245, 7
    %v247 = vsub.s32 0, %v246
    %v248 = vrot.slane %v243, %v247
    %v266 = vunpack.c.l.b16 %v227
    %v267 = vunpack.c.l.b16 %v228
    %v268 = vunpack.c.l.b16 %v229
    %v269 = vunpack.c.l.b16 %v230
    %v270 = vunpack.c.l.b16 %v231
    %v271 = vunpack.c.l.b16 %v232
    %v272 = vunpack.c.l.b16 %v233
    %v273 = vunpack.c.l.b16 %v234
    %v274 = vunpack.c.l.b16 %v235
    %v275 = vunpack.c.l.b16 %v236
    %v276 = vunpack.c.l.b16 %v237
    %v277 = vunpack.c.l.b16 %v238
    %v278 = vunpack.c.l.b16 %v239
    %v279 = vunpack.c.l.b16 %v240
    %v280 = vunpack.c.l.b16 %v241
    %v281 = vunpack.c.l.b16 %v242
    %v282 = vpack.c.b16 %v267, %v266
    %v283 = vpack.c.b16 %v269, %v268
    %v284 = vpack.c.b16 %v271, %v270
    %v285 = vpack.c.b16 %v273, %v272
    %v286 = vpack.c.b16 %v275, %v274
    %v287 = vpack.c.b16 %v277, %v276
    %v288 = vpack.c.b16 %v279, %v278
    %v289 = vpack.c.b16 %v281, %v280
    %298 = vmatprep.subr.bf16.mxu0 0
    %299 = vmatpush1.bf16.msra.mxu0 %v282
    %300 = vmatprep.subr.bf16.mxu0 0
    %301 = vmatpush1.bf16.msra.mxu0 %v283
    %302 = vmatprep.subr.bf16.mxu0 0
    %303 = vmatpush1.bf16.msra.mxu0 %v284
    %304 = vmatprep.subr.bf16.mxu0 0
    %305 = vmatpush1.bf16.msra.mxu0 %v285
    %306 = vmatprep.subr.bf16.mxu0 0
    %307 = vmatpush1.bf16.msra.mxu0 %v286
    %308 = vmatprep.subr.bf16.mxu0 0
    %309 = vmatpush1.bf16.msra.mxu0 %v287
    %310 = vmatprep.subr.bf16.mxu0 0
    %311 = vmatpush1.bf16.msra.mxu0 %v288
    %312 = vmatprep.subr.bf16.mxu0 0
    %313 = vmatpush1.bf16.msra.mxu0 %v289
    %314 = vmatprep.subr.bf16.mxu0 0
    %315 = vmatpush1.bf16.msra.mxu0 0
    %316 = vmatprep.subr.bf16.mxu0 0
    %317 = vmatpush1.bf16.msra.mxu0 0
    %318 = vmatprep.subr.bf16.mxu0 0
    %319 = vmatpush1.bf16.msra.mxu0 0
    %320 = vmatprep.subr.bf16.mxu0 0
    %321 = vmatpush1.bf16.msra.mxu0 0
    %322 = vmatprep.subr.bf16.mxu0 0
    %323 = vmatpush1.bf16.msra.mxu0 0
    %324 = vmatprep.subr.bf16.mxu0 0
    %325 = vmatpush1.bf16.msra.mxu0 0
    %326 = vmatprep.subr.bf16.mxu0 0
    %327 = vmatpush1.bf16.msra.mxu0 0
    %328 = vmatprep.subr.bf16.mxu0 0
    %329 = vmatpush1.bf16.msra.mxu0 0
    %330 = vmatprep.mubr.bf16.mxu0 0
    %331 = vmatmul.mubr.bf16.gmra.mrb[0].mxu0 %v226
    %v332 = vpop.f32.mrb[0].mxu0
    %v333 = vadd.f32 %v248, %v332
    %v334 = vpop.f32.mrb[0].mxu0
    %v335 = vpop.f32.mrb[0].mxu0
    %v336 = vpop.f32.mrb[0].mxu0
    %337 = vdwg.mxu0
    %v338 = vmul.f32 %v333, 1.442695
    %v339 = vpow.pop %v338
    %v340 = vadd.f32 %v339, 1.0
    %v341 = vlog2.pop %v340
    %v342 = vmul.f32 %v341, 0.6931472
    %v343 = vmul.f32 -0.5, %v339
    %v344 = vadd.f32 %v343, 1.0
    %v345 = vmul.f32 %v344, %v339
    %v346 = vand.u32 2147483647, %v339
    %vm347 = vcmp.lt.f32.partialorder %v346, 0.0004427343
    %v348 = vsel %vm347, %v345, %v342
    %vm349 = vcmp.gt.f32.partialorder %v333, 20.0
    %v350 = vsel %vm349, %v333, %v348
    %v351 = vpack.c.bf16 %v350, %v350
    %v352 = vld [vmem:[#allocation8] sm:$0xf]
    %v353 = vld [vmem:[#allocation8 + $0x4] sm:$0xf]
    %v354 = vld [vmem:[#allocation8 + $0x8] sm:$0xf]
    %v355 = vld [vmem:[#allocation8 + $0xc] sm:$0xf]
    %v356 = vld [vmem:[#allocation8 + $0x10] sm:$0xf]
    %v357 = vld [vmem:[#allocation8 + $0x14] sm:$0xf]
    %v358 = vld [vmem:[#allocation8 + $0x18] sm:$0xf]
    %v359 = vld [vmem:[#allocation8 + $0x1c] sm:$0xf]
    %v360 = vld [vmem:[#allocation8 + $0x20] sm:$0xf]
    %v361 = vld [vmem:[#allocation8 + $0x24] sm:$0xf]
    %v362 = vld [vmem:[#allocation8 + $0x28] sm:$0xf]
    %v363 = vld [vmem:[#allocation8 + $0x2c] sm:$0xf]
    %v364 = vld [vmem:[#allocation8 + $0x30] sm:$0xf]
    %v365 = vld [vmem:[#allocation8 + $0x34] sm:$0xf]
    %v366 = vld [vmem:[#allocation8 + $0x38] sm:$0xf]
    %v367 = vld [vmem:[#allocation8 + $0x3c] sm:$0xf]
    %v368 = vld [vmem:[%s6] sm:$0x1]
    %v370 = vlaneseq
    %v371 = vshrl.u32 %v370, 7
    %v372 = vsub.s32 0, %v371
    %v373 = vrot.slane %v368, %v372
    %v391 = vunpack.c.l.b16 %v352
    %v392 = vunpack.c.l.b16 %v353
    %v393 = vunpack.c.l.b16 %v354
    %v394 = vunpack.c.l.b16 %v355
    %v395 = vunpack.c.l.b16 %v356
    %v396 = vunpack.c.l.b16 %v357
    %v397 = vunpack.c.l.b16 %v358
    %v398 = vunpack.c.l.b16 %v359
    %v399 = vunpack.c.l.b16 %v360
    %v400 = vunpack.c.l.b16 %v361
    %v401 = vunpack.c.l.b16 %v362
    %v402 = vunpack.c.l.b16 %v363
    %v403 = vunpack.c.l.b16 %v364
    %v404 = vunpack.c.l.b16 %v365
    %v405 = vunpack.c.l.b16 %v366
    %v406 = vunpack.c.l.b16 %v367
    %v407 = vpack.c.b16 %v392, %v391
    %v408 = vpack.c.b16 %v394, %v393
    %v409 = vpack.c.b16 %v396, %v395
    %v410 = vpack.c.b16 %v398, %v397
    %v411 = vpack.c.b16 %v400, %v399
    %v412 = vpack.c.b16 %v402, %v401
    %v413 = vpack.c.b16 %v404, %v403
    %v414 = vpack.c.b16 %v406, %v405
    %423 = vmatprep.subr.bf16.mxu0 0
    %424 = vmatpush1.bf16.msra.mxu0 %v407
    %425 = vmatprep.subr.bf16.mxu0 0
    %426 = vmatpush1.bf16.msra.mxu0 %v408
    %427 = vmatprep.subr.bf16.mxu0 0
    %428 = vmatpush1.bf16.msra.mxu0 %v409
    %429 = vmatprep.subr.bf16.mxu0 0
    %430 = vmatpush1.bf16.msra.mxu0 %v410
    %431 = vmatprep.subr.bf16.mxu0 0
    %432 = vmatpush1.bf16.msra.mxu0 %v411
    %433 = vmatprep.subr.bf16.mxu0 0
    %434 = vmatpush1.bf16.msra.mxu0 %v412
    %435 = vmatprep.subr.bf16.mxu0 0
    %436 = vmatpush1.bf16.msra.mxu0 %v413
    %437 = vmatprep.subr.bf16.mxu0 0
    %438 = vmatpush1.bf16.msra.mxu0 %v414
    %439 = vmatprep.subr.bf16.mxu0 0
    %440 = vmatpush1.bf16.msra.mxu0 0
    %441 = vmatprep.subr.bf16.mxu0 0
    %442 = vmatpush1.bf16.msra.mxu0 0
    %443 = vmatprep.subr.bf16.mxu0 0
    %444 = vmatpush1.bf16.msra.mxu0 0
    %445 = vmatprep.subr.bf16.mxu0 0
    %446 = vmatpush1.bf16.msra.mxu0 0
    %447 = vmatprep.subr.bf16.mxu0 0
    %448 = vmatpush1.bf16.msra.mxu0 0
    %449 = vmatprep.subr.bf16.mxu0 0
    %450 = vmatpush1.bf16.msra.mxu0 0
    %451 = vmatprep.subr.bf16.mxu0 0
    %452 = vmatpush1.bf16.msra.mxu0 0
    %453 = vmatprep.subr.bf16.mxu0 0
    %454 = vmatpush1.bf16.msra.mxu0 0
    %455 = vmatprep.mubr.bf16.mxu0 0
    %456 = vmatmul.mubr.bf16.gmra.mrb[0].mxu0 %v351
    %v457 = vpop.f32.mrb[0].mxu0
    %v458 = vadd.f32 %v373, %v457
    %v459 = vpop.f32.mrb[0].mxu0
    %v460 = vpop.f32.mrb[0].mxu0
    %v461 = vpop.f32.mrb[0].mxu0
    %462 = vdwg.mxu0
    %v463 = vmul.f32 %v458, 1.442695
    %v464 = vpow.pop %v463
    %v465 = vadd.f32 %v464, 1.0
    %v466 = vlog2.pop %v465
    %v467 = vmul.f32 %v466, 0.6931472
    %v468 = vmul.f32 -0.5, %v464
    %v469 = vadd.f32 %v468, 1.0
    %v470 = vmul.f32 %v469, %v464
    %v471 = vand.u32 2147483647, %v464
    %vm472 = vcmp.lt.f32.partialorder %v471, 0.0004427343
    %v473 = vsel %vm472, %v470, %v467
    %vm474 = vcmp.gt.f32.partialorder %v458, 20.0
    %v475 = vsel %vm474, %v458, %v473
    %v476 = vpack.c.bf16 %v475, %v475
    %v477 = vld [vmem:[#allocation10] sm:$0xf]
    %v478 = vld [vmem:[#allocation10 + $0x4] sm:$0xf]
    %v479 = vld [vmem:[#allocation10 + $0x8] sm:$0xf]
    %v480 = vld [vmem:[#allocation10 + $0xc] sm:$0xf]
    %v481 = vld [vmem:[#allocation10 + $0x10] sm:$0xf]
    %v482 = vld [vmem:[#allocation10 + $0x14] sm:$0xf]
    %v483 = vld [vmem:[#allocation10 + $0x18] sm:$0xf]
    %v484 = vld [vmem:[#allocation10 + $0x1c] sm:$0xf]
    %v485 = vld [vmem:[#allocation10 + $0x20] sm:$0xf]
    %v486 = vld [vmem:[#allocation10 + $0x24] sm:$0xf]
    %v487 = vld [vmem:[#allocation10 + $0x28] sm:$0xf]
    %v488 = vld [vmem:[#allocation10 + $0x2c] sm:$0xf]
    %v489 = vld [vmem:[#allocation10 + $0x30] sm:$0xf]
    %v490 = vld [vmem:[#allocation10 + $0x34] sm:$0xf]
    %v491 = vld [vmem:[#allocation10 + $0x38] sm:$0xf]
    %v492 = vld [vmem:[#allocation10 + $0x3c] sm:$0xf]
    %v493 = vld [vmem:[%s8] sm:$0x1]
    %v495 = vlaneseq
    %v496 = vshrl.u32 %v495, 7
    %v497 = vsub.s32 0, %v496
    %v498 = vrot.slane %v493, %v497
    %v516 = vunpack.c.l.b16 %v477
    %v517 = vunpack.c.l.b16 %v478
    %v518 = vunpack.c.l.b16 %v479
    %v519 = vunpack.c.l.b16 %v480
    %v520 = vunpack.c.l.b16 %v481
    %v521 = vunpack.c.l.b16 %v482
    %v522 = vunpack.c.l.b16 %v483
    %v523 = vunpack.c.l.b16 %v484
    %v524 = vunpack.c.l.b16 %v485
    %v525 = vunpack.c.l.b16 %v486
    %v526 = vunpack.c.l.b16 %v487
    %v527 = vunpack.c.l.b16 %v488
    %v528 = vunpack.c.l.b16 %v489
    %v529 = vunpack.c.l.b16 %v490
    %v530 = vunpack.c.l.b16 %v491
    %v531 = vunpack.c.l.b16 %v492
    %v532 = vpack.c.b16 %v517, %v516
    %v533 = vpack.c.b16 %v519, %v518
    %v534 = vpack.c.b16 %v521, %v520
    %v535 = vpack.c.b16 %v523, %v522
    %v536 = vpack.c.b16 %v525, %v524
    %v537 = vpack.c.b16 %v527, %v526
    %v538 = vpack.c.b16 %v529, %v528
    %v539 = vpack.c.b16 %v531, %v530
    %548 = vmatprep.subr.bf16.mxu0 0
    %549 = vmatpush1.bf16.msra.mxu0 %v532
    %550 = vmatprep.subr.bf16.mxu0 0
    %551 = vmatpush1.bf16.msra.mxu0 %v533
    %552 = vmatprep.subr.bf16.mxu0 0
    %553 = vmatpush1.bf16.msra.mxu0 %v534
    %554 = vmatprep.subr.bf16.mxu0 0
    %555 = vmatpush1.bf16.msra.mxu0 %v535
    %556 = vmatprep.subr.bf16.mxu0 0
    %557 = vmatpush1.bf16.msra.mxu0 %v536
    %558 = vmatprep.subr.bf16.mxu0 0
    %559 = vmatpush1.bf16.msra.mxu0 %v537
    %560 = vmatprep.subr.bf16.mxu0 0
    %561 = vmatpush1.bf16.msra.mxu0 %v538
    %562 = vmatprep.subr.bf16.mxu0 0
    %563 = vmatpush1.bf16.msra.mxu0 %v539
    %564 = vmatprep.subr.bf16.mxu0 0
    %565 = vmatpush1.bf16.msra.mxu0 0
    %566 = vmatprep.subr.bf16.mxu0 0
    %567 = vmatpush1.bf16.msra.mxu0 0
    %568 = vmatprep.subr.bf16.mxu0 0
    %569 = vmatpush1.bf16.msra.mxu0 0
    %570 = vmatprep.subr.bf16.mxu0 0
    %571 = vmatpush1.bf16.msra.mxu0 0
    %572 = vmatprep.subr.bf16.mxu0 0
    %573 = vmatpush1.bf16.msra.mxu0 0
    %574 = vmatprep.subr.bf16.mxu0 0
    %575 = vmatpush1.bf16.msra.mxu0 0
    %576 = vmatprep.subr.bf16.mxu0 0
    %577 = vmatpush1.bf16.msra.mxu0 0
    %578 = vmatprep.subr.bf16.mxu0 0
    %579 = vmatpush1.bf16.msra.mxu0 0
    %580 = vmatprep.mubr.bf16.mxu0 0
    %581 = vmatmul.mubr.bf16.gmra.mrb[0].mxu0 %v476
    %v582 = vpop.f32.mrb[0].mxu0
    %v583 = vadd.f32 %v498, %v582
    %v584 = vpop.f32.mrb[0].mxu0
    %v585 = vpop.f32.mrb[0].mxu0
    %v586 = vpop.f32.mrb[0].mxu0
    %587 = vdwg.mxu0
    %v588 = vlaneseq
    %v589 = vand.u32 %v588, 127
    %v590 = vmax.f32 %v583, -20.0
    %v591 = vmin.f32 %v590, 2.0
    %vm592 = vcmp.ge.s32.totalorder %v589, 8
    %v593 = vsel %vm592, %v591, %v583
    %594 = vst [vmem:[#allocation11] sm:$0xff] %v593
    // Predicated region
    $region58: #{tpu_custom_call.1} parent=1 // pred_check
      _
    $region59: #{tpu_custom_call.1} parent=1 // pred_check_branch
      %596 = sbr.rel (0) target = $region61
    $region60: #{tpu_custom_call.1} parent=1 // pred_region
      %s598 = ssub.s32 128, 128
      %599 = vsyncadd [#allocation4], %s598
      %s601 = sshll.u32 [#allocation11], 4
      %s602 = int_to_ptr.vmem [resolvable:$true] %s601
      %604 = dma.vmem_to_hbm [thread:$0]  %s602, 128, %s9, [#allocation4]
    $region61: #{tpu_custom_call.1} parent=1 // pred_fallthru
      _
    // Predicated region
    $region62: #{tpu_custom_call.1} parent=1 // pred_check
      _
    $region63: #{tpu_custom_call.1} parent=1 // pred_check_branch
      %606 = sbr.rel (0) target = $region65
    $region64: #{tpu_custom_call.1} parent=1 // pred_region
      %607 = dma.done [#allocation4], 128
    $region65: #{tpu_custom_call.1} parent=1 // pred_fallthru
      _
    %608 = vsyncpa [#allocation3], 1
    %609 = vsyncpa [#allocation6], 1
    %610 = vsyncpa [#allocation9], 1
    %611 = vsyncpa [#allocation4], 1

</llo_original>
